<compile_context>
chip_gen: v7x
topology: tpu7x:2x2x1
jax: 0.10.0
libtpu: 0.0.40
codegen_flags: <defaults>
</compile_context>

<pallas_src>
import functools

import jax
import jax.numpy as jnp
from jax.experimental import pallas as pl
from jax.experimental.pallas import tpu as pltpu


def _multitask_loss_kernel(clf_pred_ref, reg_pred_ref, tgt_ref, out_ref,
                           ce_acc, sq_acc, *, clf_size, reg_size, batch, tile_b):
    i = pl.program_id(0)

    # ---- init accumulators on the first grid step ----
    @pl.when(i == 0)
    def _():
        ce_acc[...] = jnp.zeros_like(ce_acc)
        sq_acc[...] = jnp.zeros_like(sq_acc)

    # Row-validity mask: handles B not divisible by tile_b (padded rows in the
    # last block read unspecified data; they are excluded from both sums).
    row = jax.lax.broadcasted_iota(jnp.int32, (tile_b, 1), 0) + i * tile_b
    valid = row < batch                                               # (TB, 1)

    # ---- classification: CE with probability targets ----
    logits = clf_pred_ref[...].astype(jnp.float32)                    # (TB, Cc)
    soft_tgt = tgt_ref[:, :clf_size].astype(jnp.float32)              # (TB, Cc)

    m = jnp.max(logits, axis=-1, keepdims=True)                       # (TB, 1)
    shifted = logits - m
    lse = jnp.log(jnp.sum(jnp.exp(shifted), axis=-1, keepdims=True))  # (TB, 1)
    tgt_sum = jnp.sum(soft_tgt, axis=-1, keepdims=True)               # (TB, 1)
    tgt_dot = jnp.sum(soft_tgt * shifted, axis=-1, keepdims=True)     # (TB, 1)
    # -sum_c t_c * (shifted_c - lse) == lse * sum_c t_c - sum_c t_c * shifted_c
    per_row_ce = lse * tgt_sum - tgt_dot                              # (TB, 1)
    per_row_ce = jnp.where(valid, per_row_ce, 0.0)
    ce_acc[...] += jnp.sum(per_row_ce, axis=0, keepdims=True)         # (1, 1)

    # ---- regression: sum of squared differences ----
    diff = reg_pred_ref[...].astype(jnp.float32) \
        - tgt_ref[:, clf_size:].astype(jnp.float32)                   # (TB, Cr)
    sq = jnp.where(valid, diff * diff, 0.0)
    sq_acc[...] += jnp.sum(jnp.sum(sq, axis=-1, keepdims=True),
                           axis=0, keepdims=True)                     # (1, 1)

    # ---- finalize on the last grid step: true means + 'equal' combine ----
    @pl.when(i == pl.num_programs(0) - 1)
    def _():
        ce_mean = ce_acc[...] * (1.0 / batch)
        mse_mean = sq_acc[...] * (1.0 / (batch * reg_size))
        out_ref[...] = 0.5 * (ce_mean + mse_mean)


def multitask_loss(pred, target, clf_size, strategy="equal", tile_b=None):
    if strategy != "equal":
        raise NotImplementedError("Only equal strategy is implemented")
    clf_pred, reg_pred = pred
    B, c_clf = clf_pred.shape
    _, c_reg = reg_pred.shape
    assert c_clf == clf_size
    assert target.shape == (B, c_clf + c_reg)

    # Batch tile: multiple of 8 (sublane), capped so double-buffered input
    # blocks (3 inputs x 2 bufs) stay well inside the default scoped VMEM on
    # every generation (incl. v7x's 64 MiB physical / 32 MiB default).
    if tile_b is None:
        tile_b = min(B, 512)
    tile_b = max(8, (tile_b // 8) * 8)
    grid = (pl.cdiv(B, tile_b),)

    kernel = functools.partial(
        _multitask_loss_kernel,
        clf_size=clf_size, reg_size=c_reg, batch=B, tile_b=tile_b)

    out = pl.pallas_call(
        kernel,
        out_shape=jax.ShapeDtypeStruct((1, 1), jnp.float32),
        grid_spec=pltpu.PrefetchScalarGridSpec(
            num_scalar_prefetch=0,
            grid=grid,
            in_specs=[
                pl.BlockSpec((tile_b, c_clf), lambda i: (i, 0)),
                pl.BlockSpec((tile_b, c_reg), lambda i: (i, 0)),
                pl.BlockSpec((tile_b, c_clf + c_reg), lambda i: (i, 0)),
            ],
            # Same output block across the (reduction) grid axis -> resident.
            out_specs=pl.BlockSpec((1, 1), lambda i: (0, 0)),
            scratch_shapes=[pltpu.VMEM((1, 1), jnp.float32),   # CE sum
                            pltpu.VMEM((1, 1), jnp.float32)],  # sq-diff sum
        ),
        compiler_params=pltpu.CompilerParams(
            dimension_semantics=("arbitrary",),
            vmem_limit_bytes=32 * 1024 * 1024,
        ),
    )(clf_pred, reg_pred, target)
    return out[0, 0]


def _reference(pred, target, clf_size):
    clf_pred, reg_pred = pred
    clf_t = target[:, :clf_size].astype(jnp.float32)
    reg_t = target[:, clf_size:].astype(jnp.float32)
    lp = jax.nn.log_softmax(clf_pred.astype(jnp.float32), axis=-1)
    ce = jnp.mean(-jnp.sum(clf_t * lp, axis=-1))
    mse = jnp.mean((reg_pred.astype(jnp.float32) - reg_t) ** 2)
    return 0.5 * (ce + mse)


def _make_inputs(key, batch, clf, reg):
    k1, k2, k3, k4 = jax.random.split(key, 4)
    clf_pred = jax.random.normal(k1, (batch, clf), dtype=jnp.float32)
    reg_pred = jax.random.normal(k2, (batch, reg), dtype=jnp.float32)
    clf_target = jax.nn.softmax(
        jax.random.normal(k3, (batch, clf), dtype=jnp.float32), axis=-1)
    reg_target = jax.random.normal(k4, (batch, reg), dtype=jnp.float32)
    target = jnp.concatenate([clf_target, reg_target], axis=1)
    return (clf_pred, reg_pred), target


if __name__ == "__main__":
    CLF = 4   # classification outputs
    REG = 6   # regression outputs
    key = jax.random.PRNGKey(0)
    ka, kb = jax.random.split(key, 2)

    # Case 1: batch divisible by the tile -> 2 grid steps, accumulate+finalize.
    pred, target = _make_inputs(ka, batch=16, clf=CLF, reg=REG)
    loss = multitask_loss(pred, target, clf_size=CLF, strategy="equal", tile_b=8)
    loss = jax.block_until_ready(loss)
    ref = _reference(pred, target, CLF)
    assert jnp.allclose(loss, ref, rtol=1e-5, atol=1e-5), (loss, ref)

    # Case 2: batch NOT divisible by the tile -> remainder rows masked out.
    pred2, target2 = _make_inputs(kb, batch=12, clf=CLF, reg=REG)
    loss2 = multitask_loss(pred2, target2, clf_size=CLF, strategy="equal", tile_b=8)
    loss2 = jax.block_until_ready(loss2)
    ref2 = _reference(pred2, target2, CLF)
    assert jnp.allclose(loss2, ref2, rtol=1e-5, atol=1e-5), (loss2, ref2)

    print("KERNEL_OK")
</pallas_src>

<mosaic_0001>
module attributes {stable_mosaic.version = 11 : i64} {
  func.func @_multitask_loss_kernel(%arg0: i32, %arg1: memref<8x4xf32, #tpu.memory_space<vmem>>, %arg2: memref<8x6xf32, #tpu.memory_space<vmem>>, %arg3: memref<8x10xf32, #tpu.memory_space<vmem>>, %arg4: memref<1x1xf32, #tpu.memory_space<vmem>>, %arg5: memref<1x1xf32, #tpu.memory_space<vmem>>, %arg6: memref<1x1xf32, #tpu.memory_space<vmem>>) attributes {dimension_semantics = [#tpu.dimension_semantics<arbitrary>], iteration_bounds = array<i64: 2>, scalar_prefetch = 0 : i64, scratch_operands = 2 : i64, tpu.core_type = #tpu.core_type<tc>, window_params = [{transform_indices = @transform_0, window_bounds = array<i64: 8, 4>}, {transform_indices = @transform_1, window_bounds = array<i64: 8, 6>}, {transform_indices = @transform_2, window_bounds = array<i64: 8, 10>}, {pipeline_mode = #tpu.pipeline_mode<synchronous>, transform_indices = @transform_3, window_bounds = array<i64: 1, 1>}]} {
    %c0_i32 = arith.constant 0 : i32
    %0 = arith.cmpi eq, %arg0, %c0_i32 : i32
    %1 = arith.extui %0 : i1 to i32
    %c0_i32_0 = arith.constant 0 : i32
    %2 = arith.cmpi ne, %1, %c0_i32_0 : i32
    scf.if %2 {
      %cst_24 = arith.constant 0.000000e+00 : f32
      %51 = vector.broadcast %cst_24 : f32 to vector<1x1xf32>
      %c0_25 = arith.constant 0 : index
      %c0_26 = arith.constant 0 : index
      %52 = vector.load %arg5[%c0_25, %c0_26] : memref<1x1xf32, #tpu.memory_space<vmem>>, vector<1x1xf32>
      tpu.vector_store %arg5[%c0_25, %c0_26], %51 {strides = array<i32>} : memref<1x1xf32, #tpu.memory_space<vmem>>, vector<1x1xf32>,
      %cst_27 = arith.constant 0.000000e+00 : f32
      %53 = vector.broadcast %cst_27 : f32 to vector<1x1xf32>
      %c0_28 = arith.constant 0 : index
      %c0_29 = arith.constant 0 : index
      %54 = vector.load %arg6[%c0_28, %c0_29] : memref<1x1xf32, #tpu.memory_space<vmem>>, vector<1x1xf32>
      tpu.vector_store %arg6[%c0_28, %c0_29], %53 {strides = array<i32>} : memref<1x1xf32, #tpu.memory_space<vmem>>, vector<1x1xf32>,
    } else {
    }
    %3 = tpu.iota {dimensions = array<i32: 0>} : vector<8x1xi32>
    %c8_i32 = arith.constant 8 : i32
    %4 = arith.muli %arg0, %c8_i32 : i32
    %5 = vector.broadcast %4 : i32 to vector<8x1xi32>
    %6 = arith.addi %3, %5 : vector<8x1xi32>
    %c16_i32 = arith.constant 16 : i32
    %7 = vector.broadcast %c16_i32 : i32 to vector<8x1xi32>
    %8 = arith.cmpi slt, %6, %7 : vector<8x1xi32>
    %c0 = arith.constant 0 : index
    %c0_1 = arith.constant 0 : index
    %9 = vector.load %arg1[%c0, %c0_1] : memref<8x4xf32, #tpu.memory_space<vmem>>, vector<8x4xf32>
    %c0_2 = arith.constant 0 : index
    %c0_3 = arith.constant 0 : index
    %10 = vector.load %arg3[%c0_2, %c0_3] : memref<8x10xf32, #tpu.memory_space<vmem>>, vector<8x4xf32>
    %cst = arith.constant dense<0xFF800000> : vector<8xf32>
    %11 = vector.multi_reduction <maximumf>, %9, %cst [1] : vector<8x4xf32> to vector<8xf32>
    %12 = vector.shape_cast %11 : vector<8xf32> to vector<8x1xf32>
    %13 = vector.broadcast %12 : vector<8x1xf32> to vector<8x4xf32>
    %14 = arith.subf %9, %13 : vector<8x4xf32>
    %15 = math.exp %14 : vector<8x4xf32>
    %cst_4 = arith.constant dense<0.000000e+00> : vector<8xf32>
    %16 = vector.multi_reduction <add>, %15, %cst_4 [1] : vector<8x4xf32> to vector<8xf32>
    %17 = vector.shape_cast %16 : vector<8xf32> to vector<8x1xf32>
    %18 = math.log %17 : vector<8x1xf32>
    %cst_5 = arith.constant dense<0.000000e+00> : vector<8xf32>
    %19 = vector.multi_reduction <add>, %10, %cst_5 [1] : vector<8x4xf32> to vector<8xf32>
    %20 = vector.shape_cast %19 : vector<8xf32> to vector<8x1xf32>
    %21 = arith.mulf %10, %14 : vector<8x4xf32>
    %cst_6 = arith.constant dense<0.000000e+00> : vector<8xf32>
    %22 = vector.multi_reduction <add>, %21, %cst_6 [1] : vector<8x4xf32> to vector<8xf32>
    %23 = vector.shape_cast %22 : vector<8xf32> to vector<8x1xf32>
    %24 = arith.mulf %18, %20 : vector<8x1xf32>
    %25 = arith.subf %24, %23 : vector<8x1xf32>
    %cst_7 = arith.constant 0.000000e+00 : f32
    %26 = vector.broadcast %cst_7 : f32 to vector<8x1xf32>
    %27 = arith.select %8, %25, %26 : vector<8x1xi1>, vector<8x1xf32>
    %c0_8 = arith.constant 0 : index
    %c0_9 = arith.constant 0 : index
    %28 = vector.load %arg5[%c0_8, %c0_9] : memref<1x1xf32, #tpu.memory_space<vmem>>, vector<1x1xf32>
    %cst_10 = arith.constant dense<0.000000e+00> : vector<1xf32>
    %29 = vector.multi_reduction <add>, %27, %cst_10 [0] : vector<8x1xf32> to vector<1xf32>
    %30 = vector.shape_cast %29 : vector<1xf32> to vector<1x1xf32>
    %31 = arith.addf %28, %30 : vector<1x1xf32>
    %c0_11 = arith.constant 0 : index
    %c0_12 = arith.constant 0 : index
    %32 = vector.load %arg5[%c0_11, %c0_12] : memref<1x1xf32, #tpu.memory_space<vmem>>, vector<1x1xf32>
    tpu.vector_store %arg5[%c0_11, %c0_12], %31 {strides = array<i32>} : memref<1x1xf32, #tpu.memory_space<vmem>>, vector<1x1xf32>,
    %c0_13 = arith.constant 0 : index
    %c0_14 = arith.constant 0 : index
    %33 = vector.load %arg2[%c0_13, %c0_14] : memref<8x6xf32, #tpu.memory_space<vmem>>, vector<8x6xf32>
    %c0_15 = arith.constant 0 : index
    %c4 = arith.constant 4 : index
    %34 = vector.load %arg3[%c0_15, %c4] : memref<8x10xf32, #tpu.memory_space<vmem>>, vector<8x6xf32>
    %35 = arith.subf %33, %34 : vector<8x6xf32>
    %36 = arith.mulf %35, %35 : vector<8x6xf32>
    %cst_16 = arith.constant 0.000000e+00 : f32
    %37 = vector.shape_cast %8 : vector<8x1xi1> to vector<8x1xi1>
    %38 = vector.broadcast %37 : vector<8x1xi1> to vector<8x6xi1>
    %39 = vector.broadcast %cst_16 : f32 to vector<8x6xf32>
    %40 = arith.select %38, %36, %39 : vector<8x6xi1>, vector<8x6xf32>
    %c0_17 = arith.constant 0 : index
    %c0_18 = arith.constant 0 : index
    %41 = vector.load %arg6[%c0_17, %c0_18] : memref<1x1xf32, #tpu.memory_space<vmem>>, vector<1x1xf32>
    %cst_19 = arith.constant dense<0.000000e+00> : vector<8xf32>
    %42 = vector.multi_reduction <add>, %40, %cst_19 [1] : vector<8x6xf32> to vector<8xf32>
    %43 = vector.shape_cast %42 : vector<8xf32> to vector<8x1xf32>
    %cst_20 = arith.constant dense<0.000000e+00> : vector<1xf32>
    %44 = vector.multi_reduction <add>, %43, %cst_20 [0] : vector<8x1xf32> to vector<1xf32>
    %45 = vector.shape_cast %44 : vector<1xf32> to vector<1x1xf32>
    %46 = arith.addf %41, %45 : vector<1x1xf32>
    %c0_21 = arith.constant 0 : index
    %c0_22 = arith.constant 0 : index
    %47 = vector.load %arg6[%c0_21, %c0_22] : memref<1x1xf32, #tpu.memory_space<vmem>>, vector<1x1xf32>
    tpu.vector_store %arg6[%c0_21, %c0_22], %46 {strides = array<i32>} : memref<1x1xf32, #tpu.memory_space<vmem>>, vector<1x1xf32>,
    %c1_i32 = arith.constant 1 : i32
    %48 = arith.cmpi eq, %arg0, %c1_i32 : i32
    %49 = arith.extui %48 : i1 to i32
    %c0_i32_23 = arith.constant 0 : i32
    %50 = arith.cmpi ne, %49, %c0_i32_23 : i32
    scf.if %50 {
      %c0_24 = arith.constant 0 : index
      %c0_25 = arith.constant 0 : index
      %51 = vector.load %arg5[%c0_24, %c0_25] : memref<1x1xf32, #tpu.memory_space<vmem>>, vector<1x1xf32>
      %cst_26 = arith.constant 6.250000e-02 : f32
      %52 = vector.broadcast %cst_26 : f32 to vector<1x1xf32>
      %53 = arith.mulf %51, %52 : vector<1x1xf32>
      %c0_27 = arith.constant 0 : index
      %c0_28 = arith.constant 0 : index
      %54 = vector.load %arg6[%c0_27, %c0_28] : memref<1x1xf32, #tpu.memory_space<vmem>>, vector<1x1xf32>
      %cst_29 = arith.constant 0.010416667 : f32
      %55 = vector.broadcast %cst_29 : f32 to vector<1x1xf32>
      %56 = arith.mulf %54, %55 : vector<1x1xf32>
      %57 = arith.addf %53, %56 : vector<1x1xf32>
      %cst_30 = arith.constant 5.000000e-01 : f32
      %58 = vector.broadcast %cst_30 : f32 to vector<1x1xf32>
      %59 = arith.mulf %58, %57 : vector<1x1xf32>
      %c0_31 = arith.constant 0 : index
      %c0_32 = arith.constant 0 : index
      %60 = vector.load %arg4[%c0_31, %c0_32] : memref<1x1xf32, #tpu.memory_space<vmem>>, vector<1x1xf32>
      tpu.vector_store %arg4[%c0_31, %c0_32], %59 {strides = array<i32>} : memref<1x1xf32, #tpu.memory_space<vmem>>, vector<1x1xf32>,
    } else {
    }
    return
  }
  func.func @transform_0(%arg0: i32) -> (i32, i32) {
    %c0_i32 = arith.constant 0 : i32
    %c0_i32_0 = arith.constant 0 : i32
    return %arg0, %c0_i32 : i32, i32
  }
  func.func @transform_1(%arg0: i32) -> (i32, i32) {
    %c0_i32 = arith.constant 0 : i32
    %c0_i32_0 = arith.constant 0 : i32
    return %arg0, %c0_i32 : i32, i32
  }
  func.func @transform_2(%arg0: i32) -> (i32, i32) {
    %c0_i32 = arith.constant 0 : i32
    %c0_i32_0 = arith.constant 0 : i32
    return %arg0, %c0_i32 : i32, i32
  }
  func.func @transform_3(%arg0: i32) -> (i32, i32) {
    %c0_i32 = arith.constant 0 : i32
    %c0_i32_0 = arith.constant 0 : i32
    %c0_i32_1 = arith.constant 0 : i32
    return %c0_i32, %c0_i32_0 : i32, i32
  }
}

</mosaic_0001>

<llo_original>
// kernel: tpu_custom_call.1
$region0: #{tpu_custom_call.1}
  #allocation0 [shape = 'u32[]', space=smem, size = 0x4, offset = 0x4, fixed_abs, tag = 'smem constant byte address 0x4 - core index']
  #allocation1 [shape = 'u32[144,128]{1,0:T(1,128)}', space=vmem, size = 0x12000, scoped, tag = 'internal scratch']
  #allocation2 [shape = 'f32[1,1]{1,0:T(1,128)}', space=vmem, size = 0x200, scoped, tag = 'scratch operand']
  #allocation3 [shape = 'f32[1,1]{1,0:T(1,128)}', space=vmem, size = 0x200, scoped, tag = 'scratch operand']
  %s0 = inlined_call_operand.vmem [shape: f32[16,4], index: 0, kind: input, shape index: {}]
  %s1 = inlined_call_operand.vmem [shape: f32[16,6], index: 1, kind: input, shape index: {}]
  %s2 = inlined_call_operand.vmem [shape: f32[16,10], index: 2, kind: input, shape index: {}]
  %s3 = inlined_call_operand.hbm [shape: f32[1,1], index: 3, kind: output, shape index: {}]
  %s4 = sld [smem:[#allocation0]]
  $region53: #{tpu_custom_call.1} parent=0
    _
  %s6 = ssub.s32 1, %s4
  %s7 = scalar_select 0, %s6, %s4
  $region1: #{tpu_custom_call.1} parent=0
    #allocation4 [shape = 'u8[512]{0}', space=vmem, size = 0x400, scoped, tag = 'output window, operand 0, single buffered']
    #allocation5 [shape = 's32[2]{0}', space=sflag, size = 0x8, scoped, tag = 'scoped memory for tpu_custom_call.1']
    %8 = vsyncpa [#allocation5], 0
    loop: start=0, step=1, limit=4
    $region2: #{tpu_custom_call.1} parent=1 // loop_pre_header
      _
    $region3: #{tpu_custom_call.1} parent=1 // loop_header
      %s10 = sphi 0, %s14
      %p11 = scmp.ge.s32.totalorder %s10, 4
      %s20 = sphi 0, %s22
      %s23 = sphi 0, %s20
      %s24 = sphi 0, %s23
      %s40 = sphi 0, %s24
      %s46 = sphi 0, %s48
      %s49 = sphi 0, %s46
      %s50 = sphi 0, %s49
      %s66 = sphi 0, %s50
      %s72 = sphi 0, %s74
      %s75 = sphi 0, %s72
      %s76 = sphi 0, %s75
      %s92 = sphi 0, %s76
      %s96 = sphi 0, %s96
      %s98 = sphi 0, %s96
      %s99 = sphi 0, %s98
      %s113 = sphi 0, %s99
    $region4: #{tpu_custom_call.1} parent=1 // loop_header_branch
      %13 = sbr.rel (%p11) target = $region8
    $region5: #{tpu_custom_call.1} parent=1 // loop_body
      %s15 = ssub.s32 %s10, 1
      %s16 = ssub.s32 %s10, 2
      %s17 = sadd.s32 %s10, 1
      %s18 = ssub.s32 %s10, %s17
      %p19 = scmp.eq.s32.totalorder %s18, 0
      %s21 = sadd.s32 %s20, 1
      %s22 = scalar_select %p19, %s20, %s21
      %p25 = pneg %p19
      %p26 = scmp.eq.s32.totalorder %s10, 1
      %p27 = por %p25, %p26
      %p28 = scmp.ne.s32.totalorder %s20, %s23
      %p29 = scmp.eq.s32.totalorder %s10, 0
      %p30 = por %p28, %p29
      %p31 = scmp.ne.s32.totalorder %s20, %s23
      %p32 = scmp.eq.s32.totalorder %s15, 1
      %p33 = por %p31, %p32
      %p34 = scmp.ne.s32.totalorder %s23, %s24
      %p35 = scmp.eq.s32.totalorder %s15, 0
      %p36 = por %p34, %p35
      %p37 = scmp.ne.s32.totalorder %s23, %s24
      %p38 = scmp.eq.s32.totalorder %s16, 1
      %p39 = por %p37, %p38
      %p41 = scmp.ne.s32.totalorder %s24, %s40
      %p42 = scmp.eq.s32.totalorder %s16, 0
      %p43 = por %p41, %p42
      %s44 = ssub.s32 %s10, %s17
      %p45 = scmp.eq.s32.totalorder %s44, 0
      %s47 = sadd.s32 %s46, 1
      %s48 = scalar_select %p45, %s46, %s47
      %p51 = pneg %p45
      %p52 = scmp.eq.s32.totalorder %s10, 1
      %p53 = por %p51, %p52
      %p54 = scmp.ne.s32.totalorder %s46, %s49
      %p55 = scmp.eq.s32.totalorder %s10, 0
      %p56 = por %p54, %p55
      %p57 = scmp.ne.s32.totalorder %s46, %s49
      %p58 = scmp.eq.s32.totalorder %s15, 1
      %p59 = por %p57, %p58
      %p60 = scmp.ne.s32.totalorder %s49, %s50
      %p61 = scmp.eq.s32.totalorder %s15, 0
      %p62 = por %p60, %p61
      %p63 = scmp.ne.s32.totalorder %s49, %s50
      %p64 = scmp.eq.s32.totalorder %s16, 1
      %p65 = por %p63, %p64
      %p67 = scmp.ne.s32.totalorder %s50, %s66
      %p68 = scmp.eq.s32.totalorder %s16, 0
      %p69 = por %p67, %p68
      %s70 = ssub.s32 %s10, %s17
      %p71 = scmp.eq.s32.totalorder %s70, 0
      %s73 = sadd.s32 %s72, 1
      %s74 = scalar_select %p71, %s72, %s73
      %p77 = pneg %p71
      %p78 = scmp.eq.s32.totalorder %s10, 1
      %p79 = por %p77, %p78
      %p80 = scmp.ne.s32.totalorder %s72, %s75
      %p81 = scmp.eq.s32.totalorder %s10, 0
      %p82 = por %p80, %p81
      %p83 = scmp.ne.s32.totalorder %s72, %s75
      %p84 = scmp.eq.s32.totalorder %s15, 1
      %p85 = por %p83, %p84
      %p86 = scmp.ne.s32.totalorder %s75, %s76
      %p87 = scmp.eq.s32.totalorder %s15, 0
      %p88 = por %p86, %p87
      %p89 = scmp.ne.s32.totalorder %s75, %s76
      %p90 = scmp.eq.s32.totalorder %s16, 1
      %p91 = por %p89, %p90
      %p93 = scmp.ne.s32.totalorder %s76, %s92
      %p94 = scmp.eq.s32.totalorder %s16, 0
      %p95 = por %p93, %p94
      %s97 = sadd.s32 %s96, 1
      %p100 = scmp.eq.s32.totalorder %s10, 1
      %p101 = scmp.ne.s32.totalorder %s96, %s98
      %p102 = scmp.eq.s32.totalorder %s10, 0
      %p103 = por %p101, %p102
      %p104 = scmp.ne.s32.totalorder %s96, %s98
      %p105 = scmp.eq.s32.totalorder %s15, 1
      %p106 = por %p104, %p105
      %p107 = scmp.ne.s32.totalorder %s98, %s99
      %p108 = scmp.eq.s32.totalorder %s15, 0
      %p109 = por %p107, %p108
      %p110 = scmp.ne.s32.totalorder %s98, %s99
      %p111 = scmp.eq.s32.totalorder %s16, 1
      %p112 = por %p110, %p111
      %p114 = scmp.ne.s32.totalorder %s99, %s113
      %p115 = scmp.eq.s32.totalorder %s16, 0
      %p116 = por %p114, %p115
      %p117 = scmp.le.s32.totalorder 1, %s10
      %p118 = scmp.lt.s32.totalorder %s10, 3
      %p119 = pnand %p117, %p118
      %p120 = pneg %p119
      // Predicated region
      $region9: #{tpu_custom_call.1} parent=5 // pred_check
        _
      $region10: #{tpu_custom_call.1} parent=5 // pred_check_branch
        %122 = sbr.rel (%p119) target = $region12
      $region11: #{tpu_custom_call.1} parent=5 // pred_region
        %s123 = ssub.s32 %s10, 1
      $region12: #{tpu_custom_call.1} parent=5 // pred_fallthru
        _
      %p124 = scmp.lt.s32.totalorder %s10, 2
      // Predicated region
      $region13: #{tpu_custom_call.1} parent=5 // pred_check
        %p125 = pneg %p124
      $region14: #{tpu_custom_call.1} parent=5 // pred_check_branch
        %127 = sbr.rel (%p125) target = $region16
      $region15: #{tpu_custom_call.1} parent=5 // pred_region
        // Predicated region
        $region17: #{tpu_custom_call.1} parent=15 // pred_check
          %p128 = pneg %p30
        $region18: #{tpu_custom_call.1} parent=15 // pred_check_branch
          %130 = sbr.rel (%p128) target = $region20
        $region19: #{tpu_custom_call.1} parent=15 // pred_region
          %p131 = scmp.lt.s32.totalorder %s10, 1
          %s132 = scalar_select %p131, %s10, 1
          %s133 = smul.addr %s132, 8
          %s134 = scalar_lea.vmem %s0, %s133
        $region20: #{tpu_custom_call.1} parent=15 // pred_fallthru
          _
        // Predicated region
        $region21: #{tpu_custom_call.1} parent=15 // pred_check
          %p135 = pneg %p56
        $region22: #{tpu_custom_call.1} parent=15 // pred_check_branch
          %137 = sbr.rel (%p135) target = $region24
        $region23: #{tpu_custom_call.1} parent=15 // pred_region
          %p138 = scmp.lt.s32.totalorder %s10, 1
          %s139 = scalar_select %p138, %s10, 1
          %s140 = smul.addr %s139, 8
          %s141 = scalar_lea.vmem %s1, %s140
        $region24: #{tpu_custom_call.1} parent=15 // pred_fallthru
          _
        // Predicated region
        $region25: #{tpu_custom_call.1} parent=15 // pred_check
          %p142 = pneg %p82
        $region26: #{tpu_custom_call.1} parent=15 // pred_check_branch
          %144 = sbr.rel (%p142) target = $region28
        $region27: #{tpu_custom_call.1} parent=15 // pred_region
          %p145 = scmp.lt.s32.totalorder %s10, 1
          %s146 = scalar_select %p145, %s10, 1
          %s147 = smul.addr %s146, 8
          %s148 = scalar_lea.vmem %s2, %s147
        $region28: #{tpu_custom_call.1} parent=15 // pred_fallthru
          _
      $region16: #{tpu_custom_call.1} parent=5 // pred_fallthru
        _
      %p149 = scmp.le.s32.totalorder 1, %s10
      %p150 = scmp.lt.s32.totalorder %s10, 3
      %p151 = pnand %p149, %p150
      %p152 = pneg %p151
      // Predicated region
      $region29: #{tpu_custom_call.1} parent=5 // pred_check
        _
      $region30: #{tpu_custom_call.1} parent=5 // pred_check_branch
        %154 = sbr.rel (%p151) target = $region32
      $region31: #{tpu_custom_call.1} parent=5 // pred_region
        %s155 = ssub.s32 %s10, 1
        %p156 = scmp.lt.s32.totalorder %s15, 1
        %s157 = scalar_select %p156, %s15, 1
        %s158 = smul.addr %s157, 8
        %s159 = scalar_lea.vmem %s0, %s158
        %p160 = pneg %p36
        %p161 = pneg %p33
        %p162 = scmp.lt.s32.totalorder %s15, 1
        %s163 = scalar_select %p162, %s15, 1
        %s164 = smul.addr %s163, 8
        %s165 = scalar_lea.vmem %s1, %s164
        %p166 = pneg %p62
        %p167 = pneg %p59
        %p168 = scmp.lt.s32.totalorder %s15, 1
        %s169 = scalar_select %p168, %s15, 1
        %s170 = smul.addr %s169, 8
        %s171 = scalar_lea.vmem %s2, %s170
        %p172 = pneg %p88
        %p173 = pneg %p85
        %p174 = pneg %p109
        %p175 = pneg %p106
        %p176 = scmp.lt.s32.totalorder %s15, 1
        %s177 = scalar_select %p176, %s15, 1
        %s178 = smul.addr %s177, 8
        %s179 = scalar_lea.vmem %s0, %s178
        %p180 = scmp.lt.s32.totalorder %s15, 1
        %s181 = scalar_select %p180, %s15, 1
        %s182 = smul.addr %s181, 8
        %s183 = scalar_lea.vmem %s1, %s182
        %p184 = scmp.lt.s32.totalorder %s15, 1
        %s185 = scalar_select %p184, %s15, 1
        %s186 = smul.addr %s185, 8
        %s187 = scalar_lea.vmem %s2, %s186
        %p188 = scmp.eq.s32.totalorder %s15, 0
        // Predicated region
        $region33: #{tpu_custom_call.1} parent=31 // pred_check
          %p189 = pneg %p188
        $region34: #{tpu_custom_call.1} parent=31 // pred_check_branch
          %191 = sbr.rel (%p189) target = $region36
        $region35: #{tpu_custom_call.1} parent=31 // pred_region
          %vm192 = vcmask 0
          %193 = vst.msk [vmem:[#allocation2] sm:$0x1] %vm192, 0.0
          %194 = vst.msk [vmem:[#allocation3] sm:$0x1] %vm192, 0.0
        $region36: #{tpu_custom_call.1} parent=31 // pred_fallthru
          _
        %v195 = vlaneseq
        %v196 = vshrl.u32 %v195, 7
        %s197 = smul.u32 %s15, 8
        %v198 = vstv %s197
        %v199 = vadd.s32 %v196, %v198
        %vm200 = vcmp.lt.s32.totalorder %v199, 16
        %v201 = vld [vmem:[%s179] sm:$0xff]
        %v202 = vld [vmem:[%s187] sm:$0xff]
        %vm203 = vcmask 31744
        %v204 = vsel %vm203, %v201, -inf
        %205 = vmax.xlane.f32.xlu0 %v204
        %v206 = vpop.xlane.xlu0 %205
        %v207 = vsub.f32 %v201, %v206
        %v208 = vmul.f32 %v207, 1.442695
        %v209 = vpow.pop %v208
        %v210 = vsel %vm203, %v209, 0.0
        %211 = vadd.xlane.f32.xlu0 %v210
        %v212 = vpop.xlane.xlu0 %211
        %v213 = vlog2.pop %v212
        %v214 = vmul.f32 %v213, 0.6931472
        %v215 = vsel %vm203, %v202, 0.0
        %216 = vadd.xlane.f32.xlu0 %v215
        %v217 = vpop.xlane.xlu0 %216
        %v218 = vmul.f32 %v202, %v207
        %v219 = vsel %vm203, %v218, 0.0
        %220 = vadd.xlane.f32.xlu0 %v219
        %v221 = vpop.xlane.xlu0 %220
        %v222 = vmul.f32 %v214, %v217
        %v223 = vsub.f32 %v222, %v221
        %v224 = vsel %vm200, %v223, 0.0
        %v225 = vld [vmem:[#allocation2] sm:$0x1]
        %v226 = vrot.slane %v224, 4
        %v227 = vadd.f32 %v224, %v226
        %v228 = vrot.slane %v227, 2
        %v229 = vadd.f32 %v227, %v228
        %v230 = vrot.slane %v229, 1
        %v231 = vadd.f32 %v229, %v230
        %v232 = vadd.f32 %v225, %v231
        %vm233 = vcmask 0
        %234 = vst.msk [vmem:[#allocation2] sm:$0x1] %vm233, %v232
        %v235 = vld [vmem:[%s183] sm:$0xff]
        %v236 = vld [vmem:[%s187] sm:$0xff]
        %238 = vrot.lane.b32.xlu0 %v236, 124
        %v239 = vpop.permute.xlu0 %238
        %v241 = vsub.f32 %v235, %v239
        %v242 = vmul.f32 %v241, %v241
        %v243 = vsel %vm200, 1, 0
        %vm244 = vcmp.eq.s32.totalorder %v243, 1
        %v245 = vsel %vm244, %v242, 0.0
        %v246 = vld [vmem:[#allocation3] sm:$0x1]
        %vm247 = vcmask 48128
        %v248 = vsel %vm247, %v245, 0.0
        %249 = vadd.xlane.f32.xlu0 %v248
        %v250 = vpop.xlane.xlu0 %249
        %v251 = vrot.slane %v250, 4
        %v252 = vadd.f32 %v250, %v251
        %v253 = vrot.slane %v252, 2
        %v254 = vadd.f32 %v252, %v253
        %v255 = vrot.slane %v254, 1
        %v256 = vadd.f32 %v254, %v255
        %v257 = vadd.f32 %v246, %v256
        %258 = vst.msk [vmem:[#allocation3] sm:$0x1] %vm233, %v257
        %p259 = scmp.eq.s32.totalorder %s15, 1
        // Predicated region
        $region37: #{tpu_custom_call.1} parent=31 // pred_check
          %p260 = pneg %p259
        $region38: #{tpu_custom_call.1} parent=31 // pred_check_branch
          %262 = sbr.rel (%p260) target = $region40
        $region39: #{tpu_custom_call.1} parent=31 // pred_region
          %v263 = vld [vmem:[#allocation2] sm:$0x1]
          %v264 = vmul.f32 %v263, 0.0625
          %v265 = vld [vmem:[#allocation3] sm:$0x1]
          %v266 = vmul.f32 %v265, 0.010416667
          %v267 = vadd.f32 %v264, %v266
          %v268 = vmul.f32 %v267, 0.5
          %269 = vst.msk [vmem:[#allocation4] sm:$0x1] %vm233, %v268
        $region40: #{tpu_custom_call.1} parent=31 // pred_fallthru
          _
        // Predicated region
        $region41: #{tpu_custom_call.1} parent=31 // pred_check
          %p270 = pneg %p106
        $region42: #{tpu_custom_call.1} parent=31 // pred_check_branch
          %272 = sbr.rel (%p270) target = $region44
        $region43: #{tpu_custom_call.1} parent=31 // pred_region
          %s274 = ssub.s32 16, 16
          %275 = vsyncadd [#allocation5], %s274
          %s277 = sshll.u32 [#allocation4], 4
          %s278 = int_to_ptr.vmem [resolvable:$true] %s277
          %280 = dma.vmem_to_hbm [thread:$0]  %s278, 16, %s3, [#allocation5]
        $region44: #{tpu_custom_call.1} parent=31 // pred_fallthru
          _
        // Predicated region
        $region45: #{tpu_custom_call.1} parent=31 // pred_check
          %p281 = pneg %p106
        $region46: #{tpu_custom_call.1} parent=31 // pred_check_branch
          %283 = sbr.rel (%p281) target = $region48
        $region47: #{tpu_custom_call.1} parent=31 // pred_region
          %284 = dma.done [#allocation5], 16
        $region48: #{tpu_custom_call.1} parent=31 // pred_fallthru
          _
      $region32: #{tpu_custom_call.1} parent=5 // pred_fallthru
        _
      %p285 = scmp.le.s32.totalorder 2, %s10
      // Predicated region
      $region49: #{tpu_custom_call.1} parent=5 // pred_check
        %p286 = pneg %p285
      $region50: #{tpu_custom_call.1} parent=5 // pred_check_branch
        %288 = sbr.rel (%p286) target = $region52
      $region51: #{tpu_custom_call.1} parent=5 // pred_region
        %s289 = ssub.s32 %s10, 2
      $region52: #{tpu_custom_call.1} parent=5 // pred_fallthru
        _
    $region6: #{tpu_custom_call.1} parent=1 // loop_footer
      %s14 = sadd.s32 1, %s10
    $region7: #{tpu_custom_call.1} parent=1 // loop_footer_branch
      %9 = sbr.rel target = $region3
    $region8: #{tpu_custom_call.1} parent=1 // loop_exit
      _
    %290 = vsyncpa [#allocation5], 1
    %s291 = scalar_lea.sflag [#allocation5], 1
    %292 = vsyncpa %s291, 1

</llo_original>
